<compile_context>
chip_gen: v7x
topology: tpu7x:2x2x1
jax: 0.10.0
libtpu: 0.0.40
codegen_flags: <defaults>
</compile_context>

<pallas_src>
import jax
import jax.numpy as jnp
from jax import lax
from jax.experimental import pallas as pl
from jax.experimental.pallas import tpu as pltpu


def _round_up(x, m):
    return (x + m - 1) // m * m


def _vmem_capacity_bytes():
    try:
        return int(pltpu.get_tpu_info().vmem_capacity_bytes)
    except Exception:
        return 64 * 1024 * 1024  # conservative (v7x per-TC) fallback


def _choose_tiling(n, c, itemsize, vmem_cap):
    # Per-row VMEM footprint: double-buffered input block (2 * C * itemsize) plus
    # live f32 intermediates inside the kernel (f32 copy of the tile, `shifted`,
    # exp(shifted)) so bf16 inputs are sized correctly after the in-kernel upcast.
    per_row = 2 * c * itemsize + 3 * c * 4
    if vmem_cap >= 100 * 1024 * 1024:      # v5e / v6e: 128 MiB physical VMEM
        budget = 48 * 1024 * 1024
        vmem_limit = 96 * 1024 * 1024
    else:                                  # v7x: 64 MiB per TensorCore
        budget = 24 * 1024 * 1024
        vmem_limit = 48 * 1024 * 1024
    max_rows = max(8, (budget // per_row) // 8 * 8)
    n_up = _round_up(n, 8)
    tile_n = int(min(max_rows, n_up))
    # Megacore (v7x): keep >= 2 grid steps when the whole batch would fit in one
    # block, as long as the halved tile still satisfies the 8-row layout rule.
    if tile_n >= n_up and n_up >= 16:
        tile_n = int(_round_up(pl.cdiv(n, 2), 8))
    return tile_n, vmem_limit


def _make_focal_kernel(n_true, tile_n, gamma):
    def kernel(logits_ref, targets_ref, out_ref):
        # logits_ref : (tile_n, C) VMEM  (input dtype; math in f32)
        # targets_ref: (tile_n, 1) int32 VMEM
        # out_ref    : (1, 1, 128) f32 VMEM -- lane-dense per-tile partial sum
        logits = logits_ref[...].astype(jnp.float32)
        tgt = targets_ref[...]                                   # (tile_n, 1)

        # Stable log-softmax pieces; `shifted` is reused for both reductions so the
        # tile stays resident in vregs (one load, two XLU reductions).
        m = jnp.max(logits, axis=-1, keepdims=True)              # (tile_n, 1)
        shifted = logits - m                                     # (tile_n, C)
        sumexp = jnp.sum(jnp.exp(shifted), axis=-1, keepdims=True)

        col_ids = lax.broadcasted_iota(jnp.int32, logits.shape, 1)
        onehot = col_ids == tgt                                  # (tile_n, C)
        tgt_shifted = jnp.sum(jnp.where(onehot, shifted, 0.0),
                              axis=-1, keepdims=True)            # x_t - m  (<= 0)

        # ce = logsumexp - x_t; shared max cancels => ce >= 0, pt <= 1 numerically.
        ce = jnp.log(sumexp) - tgt_shifted                       # (tile_n, 1)
        pt = jnp.exp(-ce)
        # Matches PyTorch exactly (1 - exp(-ce)); -expm1(-ce) is more accurate for
        # easy samples but would diverge slightly from the reference semantics.
        one_minus_pt = 1.0 - pt
        if float(gamma) == 2.0:
            weight = one_minus_pt * one_minus_pt                 # VPU mul, not pow
        else:
            weight = jnp.power(jnp.maximum(one_minus_pt, 0.0), gamma)
        focal = weight * ce                                      # (tile_n, 1)
        # TODO(synk): per-class alpha weighting (alpha[targets]); module default is
        # alpha=None so it is not exercised here.

        # Mask rows of the (possibly out-of-bounds) last batch block; the masked
        # branch of the select does not propagate garbage/NaN from those rows.
        row_ids = lax.broadcasted_iota(jnp.int32, (tile_n, 1), 0)
        valid = (pl.program_id(0) * tile_n + row_ids) < n_true
        partial = jnp.sum(jnp.where(valid, focal, 0.0))

        # Plain lane-dense broadcast store (unmasked vst); wrapper reads lane 0.
        out_ref[...] = jnp.broadcast_to(partial, (1, 1, 128)).astype(jnp.float32)

    return kernel


def focal_loss(logits, targets, gamma=2.0, reduction="mean"):
    """logits: (N, C) float32/bfloat16, targets: (N,) int -> scalar float32."""
    n, c = logits.shape
    itemsize = jnp.dtype(logits.dtype).itemsize
    tile_n, vmem_limit = _choose_tiling(n, c, itemsize, _vmem_capacity_bytes())
    num_tiles = pl.cdiv(n, tile_n)

    targets2d = targets.astype(jnp.int32).reshape(n, 1)   # tiny; no logits copy

    out = pl.pallas_call(
        _make_focal_kernel(n, tile_n, gamma),
        out_shape=jax.ShapeDtypeStruct((num_tiles, 1, 128), jnp.float32),
        grid_spec=pltpu.PrefetchScalarGridSpec(
            num_scalar_prefetch=0,
            grid=(num_tiles,),
            in_specs=[
                pl.BlockSpec((tile_n, c), lambda i: (i, 0)),
                pl.BlockSpec((tile_n, 1), lambda i: (i, 0)),
            ],
            out_specs=pl.BlockSpec((1, 1, 128), lambda i: (i, 0, 0)),
        ),
        compiler_params=pltpu.CompilerParams(
            dimension_semantics=("parallel",),
            vmem_limit_bytes=vmem_limit,
        ),
    )(logits, targets2d)

    total = jnp.sum(out[:, 0, 0])   # tiny (num_tiles,) reduction in the wrapper
    if reduction == "mean":
        return total / n
    if reduction == "sum":
        return total
    # TODO(synk): reduction='none' would need a per-row (N,) output block layout.
    raise NotImplementedError("reduction='none' not implemented in the kernel")


def _focal_loss_ref(logits, targets, gamma=2.0):
    # Pure-JAX reference (mirrors F.cross_entropy + focal weighting, mean).
    lg = logits.astype(jnp.float32)
    lse = jax.scipy.special.logsumexp(lg, axis=-1)
    tgt_logit = jnp.take_along_axis(lg, targets[:, None], axis=-1)[:, 0]
    ce = lse - tgt_logit
    pt = jnp.exp(-ce)
    return jnp.mean((1.0 - pt) ** gamma * ce)


if __name__ == "__main__":
    key = jax.random.PRNGKey(0)
    k1, k2, k3, k4 = jax.random.split(key, 4)

    # Case 1: module-style small shapes (batch=8, num_classes=16); single tile.
    N1, C1 = 8, 16
    logits1 = jax.random.normal(k1, (N1, C1), dtype=jnp.float32)
    targets1 = jax.random.randint(k2, (N1,), 0, C1, dtype=jnp.int32)
    loss1 = focal_loss(logits1, targets1)
    jax.block_until_ready(loss1)
    ref1 = _focal_loss_ref(logits1, targets1)
    assert jnp.allclose(loss1, ref1, rtol=1e-5, atol=1e-5), (loss1, ref1)

    # Case 2: multi-tile grid, ragged class lanes (C=10) and ragged batch tail
    # (N=37 not a multiple of the tile) with no wrapper-side padding.
    N2, C2 = 37, 10
    logits2 = jax.random.normal(k3, (N2, C2), dtype=jnp.float32)
    targets2 = jax.random.randint(k4, (N2,), 0, C2, dtype=jnp.int32)
    loss2 = focal_loss(logits2, targets2)
    jax.block_until_ready(loss2)
    ref2 = _focal_loss_ref(logits2, targets2)
    assert jnp.allclose(loss2, ref2, rtol=1e-5, atol=1e-5), (loss2, ref2)

    # Case 3: 'sum' reduction path.
    loss3 = focal_loss(logits2, targets2, reduction="sum")
    jax.block_until_ready(loss3)
    ref3 = _focal_loss_ref(logits2, targets2) * N2
    assert jnp.allclose(loss3, ref3, rtol=1e-5, atol=1e-5), (loss3, ref3)

    print("KERNEL_OK")
</pallas_src>

<mosaic_0001>
module attributes {stable_mosaic.version = 11 : i64} {
  func.func @kernel(%arg0: i32, %arg1: memref<8x16xf32, #tpu.memory_space<vmem>>, %arg2: memref<8x1xi32, #tpu.memory_space<vmem>>, %arg3: memref<1x1x128xf32, #tpu.memory_space<vmem>>) attributes {dimension_semantics = [#tpu.dimension_semantics<parallel>], iteration_bounds = array<i64: 1>, scalar_prefetch = 0 : i64, scratch_operands = 0 : i64, tpu.core_type = #tpu.core_type<tc>, window_params = [{transform_indices = @transform_0, window_bounds = array<i64: 8, 16>}, {transform_indices = @transform_1, window_bounds = array<i64: 8, 1>}, {transform_indices = @transform_2, window_bounds = array<i64: 1, 1, 128>}]} {
    %c0 = arith.constant 0 : index
    %c0_0 = arith.constant 0 : index
    %0 = vector.load %arg1[%c0, %c0_0] : memref<8x16xf32, #tpu.memory_space<vmem>>, vector<8x16xf32>
    %c0_1 = arith.constant 0 : index
    %c0_2 = arith.constant 0 : index
    %1 = vector.load %arg2[%c0_1, %c0_2] : memref<8x1xi32, #tpu.memory_space<vmem>>, vector<8x1xi32>
    %cst = arith.constant dense<0xFF800000> : vector<8xf32>
    %2 = vector.multi_reduction <maximumf>, %0, %cst [1] : vector<8x16xf32> to vector<8xf32>
    %3 = vector.shape_cast %2 : vector<8xf32> to vector<8x1xf32>
    %4 = vector.broadcast %3 : vector<8x1xf32> to vector<8x16xf32>
    %5 = arith.subf %0, %4 : vector<8x16xf32>
    %6 = math.exp %5 : vector<8x16xf32>
    %cst_3 = arith.constant dense<0.000000e+00> : vector<8xf32>
    %7 = vector.multi_reduction <add>, %6, %cst_3 [1] : vector<8x16xf32> to vector<8xf32>
    %8 = vector.shape_cast %7 : vector<8xf32> to vector<8x1xf32>
    %9 = tpu.iota {dimensions = array<i32: 1>} : vector<8x16xi32>
    %10 = vector.broadcast %1 : vector<8x1xi32> to vector<8x16xi32>
    %11 = arith.cmpi eq, %9, %10 : vector<8x16xi32>
    %cst_4 = arith.constant 0.000000e+00 : f32
    %12 = vector.broadcast %cst_4 : f32 to vector<8x16xf32>
    %13 = arith.select %11, %5, %12 : vector<8x16xi1>, vector<8x16xf32>
    %cst_5 = arith.constant dense<0.000000e+00> : vector<8xf32>
    %14 = vector.multi_reduction <add>, %13, %cst_5 [1] : vector<8x16xf32> to vector<8xf32>
    %15 = vector.shape_cast %14 : vector<8xf32> to vector<8x1xf32>
    %16 = math.log %8 : vector<8x1xf32>
    %17 = arith.subf %16, %15 : vector<8x1xf32>
    %cst_6 = arith.constant 0.000000e+00 : f32
    %18 = vector.broadcast %cst_6 : f32 to vector<8x1xf32>
    %19 = arith.subf %18, %17 : vector<8x1xf32>
    %20 = math.exp %19 : vector<8x1xf32>
    %cst_7 = arith.constant 1.000000e+00 : f32
    %21 = vector.broadcast %cst_7 : f32 to vector<8x1xf32>
    %22 = arith.subf %21, %20 : vector<8x1xf32>
    %23 = arith.mulf %22, %22 : vector<8x1xf32>
    %24 = arith.mulf %23, %17 : vector<8x1xf32>
    %25 = tpu.iota {dimensions = array<i32: 0>} : vector<8x1xi32>
    %c8_i32 = arith.constant 8 : i32
    %26 = arith.muli %arg0, %c8_i32 : i32
    %27 = vector.broadcast %26 : i32 to vector<8x1xi32>
    %28 = arith.addi %27, %25 : vector<8x1xi32>
    %c8_i32_8 = arith.constant 8 : i32
    %29 = vector.broadcast %c8_i32_8 : i32 to vector<8x1xi32>
    %30 = arith.cmpi slt, %28, %29 : vector<8x1xi32>
    %cst_9 = arith.constant 0.000000e+00 : f32
    %31 = vector.broadcast %cst_9 : f32 to vector<8x1xf32>
    %32 = arith.select %30, %24, %31 : vector<8x1xi1>, vector<8x1xf32>
    %33 = vector.shape_cast %32 : vector<8x1xf32> to vector<1x8x1xf32>
    %cst_10 = arith.constant dense<0.000000e+00> : vector<1xf32>
    %34 = vector.multi_reduction <add>, %33, %cst_10 [1, 2] : vector<1x8x1xf32> to vector<1xf32>
    %35 = vector.shape_cast %34 : vector<1xf32> to vector<1x1x1xf32>
    %36 = vector.extract %35[0, 0, 0] : f32 from vector<1x1x1xf32>
    %37 = vector.broadcast %36 : f32 to vector<1x1x128xf32>
    %c0_11 = arith.constant 0 : index
    %c0_12 = arith.constant 0 : index
    %c0_13 = arith.constant 0 : index
    %38 = vector.load %arg3[%c0_11, %c0_12, %c0_13] : memref<1x1x128xf32, #tpu.memory_space<vmem>>, vector<1x1x128xf32>
    tpu.vector_store %arg3[%c0_11, %c0_12, %c0_13], %37 {strides = array<i32>} : memref<1x1x128xf32, #tpu.memory_space<vmem>>, vector<1x1x128xf32>,
    return
  }
  func.func @transform_0(%arg0: i32) -> (i32, i32) {
    %c0_i32 = arith.constant 0 : i32
    %c0_i32_0 = arith.constant 0 : i32
    return %arg0, %c0_i32 : i32, i32
  }
  func.func @transform_1(%arg0: i32) -> (i32, i32) {
    %c0_i32 = arith.constant 0 : i32
    %c0_i32_0 = arith.constant 0 : i32
    return %arg0, %c0_i32 : i32, i32
  }
  func.func @transform_2(%arg0: i32) -> (i32, i32, i32) {
    %c0_i32 = arith.constant 0 : i32
    %c0_i32_0 = arith.constant 0 : i32
    %c0_i32_1 = arith.constant 0 : i32
    return %arg0, %c0_i32, %c0_i32_0 : i32, i32, i32
  }
}

</mosaic_0001>

<llo_original>
// kernel: tpu_custom_call.1
$region0: #{tpu_custom_call.1}
  #allocation0 [shape = 'u32[]', space=smem, size = 0x4, offset = 0x4, fixed_abs, tag = 'smem constant byte address 0x4 - core index']
  #allocation1 [shape = 'u32[144,128]{1,0:T(1,128)}', space=vmem, size = 0x12000, scoped, tag = 'internal scratch']
  %s0 = inlined_call_operand.vmem [shape: f32[8,16], index: 0, kind: input, shape index: {}]
  %s1 = inlined_call_operand.vmem [shape: s32[8,1], index: 1, kind: input, shape index: {}]
  %s2 = inlined_call_operand.hbm [shape: f32[1,1,128], index: 2, kind: output, shape index: {}]
  %s3 = sld [smem:[#allocation0]]
  $region18: #{tpu_custom_call.1} parent=0
    _
  %s5 = ssub.s32 1, %s3
  %s6 = scalar_select 0, %s5, %s3
  $region1: #{tpu_custom_call.1} parent=0
    #allocation2 [shape = 'u8[512]{0}', space=vmem, size = 0x400, scoped, tag = 'output window, operand 0, single buffered']
    #allocation3 [shape = 's32[1]{0}', space=sflag, size = 0x4, scoped, tag = 'scoped memory for tpu_custom_call.1']
    %7 = vsyncpa [#allocation3], 0
    // Predicated region
    $region2: #{tpu_custom_call.1} parent=1 // pred_check
      _
    $region3: #{tpu_custom_call.1} parent=1 // pred_check_branch
      %9 = sbr.rel (0) target = $region5
    $region4: #{tpu_custom_call.1} parent=1 // pred_region
      _
    $region5: #{tpu_custom_call.1} parent=1 // pred_fallthru
      _
    // Predicated region
    $region6: #{tpu_custom_call.1} parent=1 // pred_check
      _
    $region7: #{tpu_custom_call.1} parent=1 // pred_check_branch
      %11 = sbr.rel (0) target = $region9
    $region8: #{tpu_custom_call.1} parent=1 // pred_region
      _
    $region9: #{tpu_custom_call.1} parent=1 // pred_fallthru
      _
    %v12 = vld [vmem:[%s0] sm:$0xff]
    %v13 = vld [vmem:[%s1] sm:$0xff]
    %vm14 = vcmask 130048
    %v15 = vsel %vm14, %v12, -inf
    %16 = vmax.xlane.f32.xlu0 %v15
    %v17 = vpop.xlane.xlu0 %16
    %v18 = vsub.f32 %v12, %v17
    %v19 = vmul.f32 %v18, 1.442695
    %v20 = vpow.pop %v19
    %v21 = vsel %vm14, %v20, 0.0
    %22 = vadd.xlane.f32.xlu0 %v21
    %v23 = vpop.xlane.xlu0 %22
    %v24 = vlaneseq
    %v25 = vand.u32 %v24, 127
    %26 = vset.pattern.permute.xlu0 0
    %27 = vperm.xlu0 %26, %v13
    %v28 = vpop.permute.xlu0 %27
    %vm29 = vcmp.eq.s32.totalorder %v25, %v28
    %v30 = vsel %vm29, %v18, 0.0
    %v31 = vsel %vm14, %v30, 0.0
    %32 = vadd.xlane.f32.xlu0 %v31
    %v33 = vpop.xlane.xlu0 %32
    %v34 = vlog2.pop %v23
    %v35 = vmul.f32 %v34, 0.6931472
    %v36 = vsub.f32 %v35, %v33
    %v37 = vsub.f32 0.0, %v36
    %v38 = vmul.f32 %v37, 1.442695
    %v39 = vpow.pop %v38
    %v40 = vsub.f32 1.0, %v39
    %v41 = vmul.f32 %v40, %v40
    %v42 = vmul.f32 %v41, %v36
    %v43 = vlaneseq
    %v44 = vshrl.u32 %v43, 7
    %s45 = smul.u32 0, 8
    %v46 = vstv %s45
    %v47 = vadd.s32 %v46, %v44
    %vm48 = vcmp.lt.s32.totalorder %v47, 8
    %v49 = vsel %vm48, %v42, 0.0
    %vm50 = vcmask 7168
    %v51 = vsel %vm50, %v49, 0.0
    %52 = vadd.xlane.f32.xlu0 %v51
    %v53 = vpop.xlane.xlu0 %52
    %v54 = vrot.slane %v53, 4
    %v55 = vadd.f32 %v53, %v54
    %v56 = vrot.slane %v55, 2
    %v57 = vadd.f32 %v55, %v56
    %v58 = vrot.slane %v57, 1
    %v59 = vadd.f32 %v57, %v58
    %s60 = vtos %v59
    %v61 = vstv %s60
    %62 = vst [vmem:[#allocation2] sm:$0x1] %v61
    // Predicated region
    $region10: #{tpu_custom_call.1} parent=1 // pred_check
      _
    $region11: #{tpu_custom_call.1} parent=1 // pred_check_branch
      %64 = sbr.rel (0) target = $region13
    $region12: #{tpu_custom_call.1} parent=1 // pred_region
      %s66 = ssub.s32 16, 16
      %67 = vsyncadd [#allocation3], %s66
      %s69 = sshll.u32 [#allocation2], 4
      %s70 = int_to_ptr.vmem [resolvable:$true] %s69
      %72 = dma.vmem_to_hbm [thread:$0]  %s70, 16, %s2, [#allocation3]
    $region13: #{tpu_custom_call.1} parent=1 // pred_fallthru
      _
    // Predicated region
    $region14: #{tpu_custom_call.1} parent=1 // pred_check
      _
    $region15: #{tpu_custom_call.1} parent=1 // pred_check_branch
      %74 = sbr.rel (0) target = $region17
    $region16: #{tpu_custom_call.1} parent=1 // pred_region
      %75 = dma.done [#allocation3], 16
    $region17: #{tpu_custom_call.1} parent=1 // pred_fallthru
      _
    %76 = vsyncpa [#allocation3], 1

</llo_original>
